<compile_context>
chip_gen: v7x
topology: tpu7x:2x2x1
jax: 0.10.0
libtpu: 0.0.40
codegen_flags: <defaults>
</compile_context>

<pallas_src>
import functools

import jax
import jax.numpy as jnp
from jax.experimental import pallas as pl
from jax.experimental.pallas import tpu as pltpu

EPS = 1e-5


def _round_up(x, m):
    return ((x + m - 1) // m) * m


def _pick_tn(n_pad, max_tn=512):
    """Largest multiple of 128 that divides n_pad and is <= max_tn."""
    if n_pad <= max_tn:
        return n_pad
    t = (max_tn // 128) * 128
    while t > 128:
        if n_pad % t == 0:
            return t
        t -= 128
    return 128


def _gram_bn_body(xr, xc, gamma_ref, beta_ref, o_ref, *, n_valid):
    """Accumulate a partial Gram tile into o_ref; sigmoid+BN epilogue on last k."""
    k = pl.program_id(1)
    num_k = pl.num_programs(1)

    # Contraction over the last axis of both operands (no explicit transpose /
    # XLU copy); bf16 (or f32) MXU inputs with f32 accumulation straight into
    # the resident output block.
    partial = jax.lax.dot_general(
        xr, xc,
        dimension_numbers=(((1,), (1,)), ((), ())),
        preferred_element_type=jnp.float32,
    )

    @pl.when(k == 0)
    def _init():
        o_ref[...] = partial

    @pl.when(k > 0)
    def _accum():
        o_ref[...] += partial

    @pl.when(k == num_k - 1)
    def _finalize():
        h = o_ref[...]                                   # (n_pad, tn) f32
        # sigmoid(x) == 0.5 * (tanh(x/2) + 1): tanh runs on the EUP slot.
        h = 0.5 * (jnp.tanh(0.5 * h) + 1.0)

        n_pad = h.shape[0]
        inv_n = jnp.float32(1.0 / n_valid)

        # Single-pass batch stats (biased variance = training-mode BN):
        # var = E[h^2] - mean^2.  Padded rows (>= n_valid) must not contribute.
        if n_valid == n_pad:
            s1 = jnp.sum(h, axis=0, keepdims=True)
            s2 = jnp.sum(h * h, axis=0, keepdims=True)
        else:
            row_ids = jax.lax.broadcasted_iota(jnp.int32, (n_pad, 1), 0)
            valid = (row_ids < n_valid).astype(jnp.float32)
            hv = h * valid
            s1 = jnp.sum(hv, axis=0, keepdims=True)
            s2 = jnp.sum(hv * h, axis=0, keepdims=True)

        mean = s1 * inv_n
        var = s2 * inv_n - mean * mean
        scale = jax.lax.rsqrt(var + EPS) * gamma_ref[...]   # fold gamma once
        o_ref[...] = (h - mean) * scale + beta_ref[...]


def decoder_layer_kernel_shared(x_ref, gamma_ref, beta_ref, o_ref, *, n_valid):
    # num_j == 1: same VMEM tile feeds both MXU operands (half the input DMA).
    xv = x_ref[...]
    _gram_bn_body(xv, xv, gamma_ref, beta_ref, o_ref, n_valid=n_valid)


def decoder_layer_kernel_split(xr_ref, xc_ref, gamma_ref, beta_ref, o_ref, *, n_valid):
    _gram_bn_body(xr_ref[...], xc_ref[...], gamma_ref, beta_ref, o_ref,
                  n_valid=n_valid)


def decoder_layer(inputs, gamma, beta, *, matmul_dtype=jnp.bfloat16,
                  tk=1024, tn=None):
    """inputs: (N, D); gamma, beta: (N,).  Returns the (N, N) normalized Gram."""
    n, d = inputs.shape
    if gamma.shape != (n,) or beta.shape != (n,):
        raise ValueError("BatchNorm1d(num_features) requires num_features == N")

    # Lane-dense output rows/cols: pad N to 128; for larger N prefer 256
    # alignment (v6e/v7x MXUs are 256-wide, avoids half-utilized final stripe).
    n_pad = _round_up(n, 128)
    if n > 256 and n_pad % 256 != 0:
        n_pad = _round_up(n, 256)

    # Contraction tile: full D when it fits one tile, else 128-aligned tk tiles.
    tk = max(128, _round_up(tk, 128))
    if d <= tk:
        tk_eff, d_pad = d, d
    else:
        tk_eff, d_pad = tk, _round_up(d, tk)
    num_k = d_pad // tk_eff

    # Output column tile: BN stats are per-column, so each tile's epilogue is
    # self-contained.  Enables megacore sharding over j and bounds resident VMEM.
    if tn is None:
        tn = _pick_tn(n_pad)
    else:
        tn = max(128, _round_up(tn, 128))
        if n_pad % tn != 0:
            tn = _pick_tn(n_pad, max_tn=tn)
    num_j = n_pad // tn

    # Pad + cast in the wrapper: halves X DMA and the double-buffered tile VMEM
    # vs. casting per-step inside the kernel; f32 accumulation is preserved via
    # preferred_element_type.
    x_p = jnp.pad(inputs.astype(matmul_dtype), ((0, n_pad - n), (0, d_pad - d)))
    gamma_p = jnp.pad(gamma.astype(jnp.float32), (0, n_pad - n),
                      constant_values=1.0).reshape(1, n_pad)
    beta_p = jnp.pad(beta.astype(jnp.float32), (0, n_pad - n)).reshape(1, n_pad)

    if num_j == 1:
        kernel = functools.partial(decoder_layer_kernel_shared, n_valid=n)
        x_specs = [pl.BlockSpec((n_pad, tk_eff), lambda j, k: (0, k))]
        x_args = (x_p,)
    else:
        kernel = functools.partial(decoder_layer_kernel_split, n_valid=n)
        x_specs = [pl.BlockSpec((n_pad, tk_eff), lambda j, k: (0, k)),
                   pl.BlockSpec((tn, tk_eff), lambda j, k: (j, k))]
        x_args = (x_p, x_p)

    # VMEM footprint: double-buffered X tiles + double-buffered output column
    # block + epilogue temporaries + params; cap against this chip's physical
    # VMEM (v7x: 64 MiB) with ~8 MiB headroom.
    isz = jnp.dtype(matmul_dtype).itemsize
    est = (2 * n_pad * tk_eff * isz
           + (0 if num_j == 1 else 2 * tn * tk_eff * isz)
           + 2 * n_pad * tn * 4          # output block (double-buffered)
           + 2 * n_pad * tn * 4          # epilogue temporaries (h, h*h)
           + 4 * 4 * n_pad)              # gamma/beta
    try:
        vmem_cap = int(pltpu.get_tpu_info().vmem_capacity_bytes)
    except Exception:
        vmem_cap = 64 * 1024 * 1024
    vmem_limit = int(min(max(est + (4 << 20), 32 << 20), vmem_cap - (8 << 20)))

    out_padded = pl.pallas_call(
        kernel,
        out_shape=jax.ShapeDtypeStruct((n_pad, n_pad), jnp.float32),
        grid_spec=pltpu.PrefetchScalarGridSpec(
            num_scalar_prefetch=0,
            grid=(num_j, num_k),
            in_specs=x_specs + [
                pl.BlockSpec((1, tn), lambda j, k: (0, j)),
                pl.BlockSpec((1, tn), lambda j, k: (0, j)),
            ],
            out_specs=pl.BlockSpec((n_pad, tn), lambda j, k: (0, j)),
        ),
        compiler_params=pltpu.CompilerParams(
            dimension_semantics=("parallel", "arbitrary"),
            vmem_limit_bytes=vmem_limit,
        ),
    )(*x_args, gamma_p, beta_p)

    return out_padded[:n, :n]


def decoder_layer_ref(inputs, gamma, beta, *, matmul_dtype=jnp.float32):
    """Pure-JAX reference matching the PyTorch forward (training-mode BN)."""
    x = inputs.astype(matmul_dtype)
    h = jax.lax.dot_general(x, x, dimension_numbers=(((1,), (1,)), ((), ())),
                            preferred_element_type=jnp.float32)
    h = jax.nn.sigmoid(h)
    mean = jnp.mean(h, axis=0, keepdims=True)
    var = jnp.mean((h - mean) ** 2, axis=0, keepdims=True)
    return (h - mean) / jnp.sqrt(var + EPS) * gamma[None, :] + beta[None, :]


if __name__ == "__main__":
    key = jax.random.PRNGKey(0)
    k1, k2, k3 = jax.random.split(key, 3)

    # Case 1: exact f32 MXU path, single k-step, shared-operand path.
    N1, D1 = 8, 32
    x1 = jax.random.normal(k1, (N1, D1), dtype=jnp.float32) / jnp.sqrt(float(D1))
    g1 = jnp.ones((N1,), dtype=jnp.float32)    # PyTorch BatchNorm1d default init
    b1 = jnp.zeros((N1,), dtype=jnp.float32)
    out1 = jax.block_until_ready(decoder_layer(x1, g1, b1, matmul_dtype=jnp.float32))
    ref1 = decoder_layer_ref(x1, g1, b1, matmul_dtype=jnp.float32)
    assert out1.shape == (N1, N1)
    assert jnp.allclose(out1, ref1, atol=2e-3, rtol=2e-3), "f32 path mismatch vs reference"

    # Case 2: bf16 MXU inputs + tiled contraction (D > tk exercises the k-grid).
    N2, D2 = 16, 640
    x2 = jax.random.normal(k2, (N2, D2), dtype=jnp.float32) / jnp.sqrt(float(D2))
    g2 = jnp.ones((N2,), dtype=jnp.float32)
    b2 = jnp.zeros((N2,), dtype=jnp.float32)
    out2 = jax.block_until_ready(decoder_layer(x2, g2, b2, matmul_dtype=jnp.bfloat16, tk=256))
    ref2 = decoder_layer_ref(x2, g2, b2, matmul_dtype=jnp.bfloat16)
    assert out2.shape == (N2, N2)
    assert jnp.allclose(out2, ref2, atol=5e-3, rtol=5e-3), "bf16 path mismatch vs reference"

    # Case 3: column-tiled output (num_j > 1 -> split-operand path, parallel j).
    N3, D3 = 200, 160
    x3 = jax.random.normal(k3, (N3, D3), dtype=jnp.float32) / jnp.sqrt(float(D3))
    g3 = jnp.ones((N3,), dtype=jnp.float32)
    b3 = jnp.zeros((N3,), dtype=jnp.float32)
    out3 = jax.block_until_ready(decoder_layer(x3, g3, b3, matmul_dtype=jnp.bfloat16, tn=128))
    ref3 = decoder_layer_ref(x3, g3, b3, matmul_dtype=jnp.bfloat16)
    assert out3.shape == (N3, N3)
    assert jnp.allclose(out3, ref3, atol=5e-3, rtol=5e-3), "column-tiled path mismatch vs reference"

    print("KERNEL_OK")
</pallas_src>

<mosaic_0001>
module attributes {stable_mosaic.version = 11 : i64} {
  func.func @decoder_layer_kernel_shared(%arg0: i32, %arg1: i32, %arg2: memref<128x32xf32, #tpu.memory_space<vmem>>, %arg3: memref<1x128xf32, #tpu.memory_space<vmem>>, %arg4: memref<1x128xf32, #tpu.memory_space<vmem>>, %arg5: memref<128x128xf32, #tpu.memory_space<vmem>>) attributes {dimension_semantics = [#tpu.dimension_semantics<parallel>, #tpu.dimension_semantics<arbitrary>], iteration_bounds = array<i64: 1, 1>, scalar_prefetch = 0 : i64, scratch_operands = 0 : i64, tpu.core_type = #tpu.core_type<tc>, window_params = [{transform_indices = @transform_0, window_bounds = array<i64: 128, 32>}, {transform_indices = @transform_1, window_bounds = array<i64: 1, 128>}, {transform_indices = @transform_2, window_bounds = array<i64: 1, 128>}, {transform_indices = @transform_3, window_bounds = array<i64: 128, 128>}]} {
    %c0 = arith.constant 0 : index
    %c0_0 = arith.constant 0 : index
    %0 = vector.load %arg2[%c0, %c0_0] : memref<128x32xf32, #tpu.memory_space<vmem>>, vector<128x32xf32>
    %cst = arith.constant dense<0.000000e+00> : vector<128x128xf32>
    %1 = tpu.matmul %0, %0, %cst {dimension_numbers = #tpu.dot_dimension_numbers<[1], [1], [0], [0], [0, 0, 1, 0], [], []>} : vector<128x32xf32>, vector<128x32xf32>, vector<128x128xf32> -> vector<128x128xf32>
    %c0_i32 = arith.constant 0 : i32
    %2 = arith.cmpi eq, %arg1, %c0_i32 : i32
    %3 = arith.extui %2 : i1 to i32
    %c0_i32_1 = arith.constant 0 : i32
    %4 = arith.cmpi ne, %3, %c0_i32_1 : i32
    scf.if %4 {
      %c0_6 = arith.constant 0 : index
      %c0_7 = arith.constant 0 : index
      %11 = vector.load %arg5[%c0_6, %c0_7] : memref<128x128xf32, #tpu.memory_space<vmem>>, vector<128x128xf32>
      tpu.vector_store %arg5[%c0_6, %c0_7], %1 {strides = array<i32>} : memref<128x128xf32, #tpu.memory_space<vmem>>, vector<128x128xf32>,
    } else {
    }
    %c0_i32_2 = arith.constant 0 : i32
    %5 = arith.cmpi sgt, %arg1, %c0_i32_2 : i32
    %6 = arith.extui %5 : i1 to i32
    %c0_i32_3 = arith.constant 0 : i32
    %7 = arith.cmpi ne, %6, %c0_i32_3 : i32
    scf.if %7 {
      %c0_6 = arith.constant 0 : index
      %c0_7 = arith.constant 0 : index
      %11 = vector.load %arg5[%c0_6, %c0_7] : memref<128x128xf32, #tpu.memory_space<vmem>>, vector<128x128xf32>
      %12 = arith.addf %11, %1 : vector<128x128xf32>
      %c0_8 = arith.constant 0 : index
      %c0_9 = arith.constant 0 : index
      %13 = vector.load %arg5[%c0_8, %c0_9] : memref<128x128xf32, #tpu.memory_space<vmem>>, vector<128x128xf32>
      tpu.vector_store %arg5[%c0_8, %c0_9], %12 {strides = array<i32>} : memref<128x128xf32, #tpu.memory_space<vmem>>, vector<128x128xf32>,
    } else {
    }
    %c0_i32_4 = arith.constant 0 : i32
    %8 = arith.cmpi eq, %arg1, %c0_i32_4 : i32
    %9 = arith.extui %8 : i1 to i32
    %c0_i32_5 = arith.constant 0 : i32
    %10 = arith.cmpi ne, %9, %c0_i32_5 : i32
    scf.if %10 {
      %c0_6 = arith.constant 0 : index
      %c0_7 = arith.constant 0 : index
      %11 = vector.load %arg5[%c0_6, %c0_7] : memref<128x128xf32, #tpu.memory_space<vmem>>, vector<128x128xf32>
      %cst_8 = arith.constant 5.000000e-01 : f32
      %12 = vector.broadcast %cst_8 : f32 to vector<128x128xf32>
      %13 = arith.mulf %12, %11 : vector<128x128xf32>
      %14 = math.tanh %13 : vector<128x128xf32>
      %cst_9 = arith.constant 1.000000e+00 : f32
      %15 = vector.broadcast %cst_9 : f32 to vector<128x128xf32>
      %16 = arith.addf %14, %15 : vector<128x128xf32>
      %cst_10 = arith.constant 5.000000e-01 : f32
      %17 = vector.broadcast %cst_10 : f32 to vector<128x128xf32>
      %18 = arith.mulf %17, %16 : vector<128x128xf32>
      %19 = tpu.iota {dimensions = array<i32: 0>} : vector<128x1xi32>
      %c8_i32 = arith.constant 8 : i32
      %20 = vector.broadcast %c8_i32 : i32 to vector<128x1xi32>
      %21 = arith.cmpi slt, %19, %20 : vector<128x1xi32>
      %22 = arith.extui %21 : vector<128x1xi1> to vector<128x1xi32>
      %23 = arith.sitofp %22 : vector<128x1xi32> to vector<128x1xf32>
      %24 = vector.broadcast %23 : vector<128x1xf32> to vector<128x128xf32>
      %25 = arith.mulf %18, %24 : vector<128x128xf32>
      %cst_11 = arith.constant dense<0.000000e+00> : vector<128xf32>
      %26 = vector.multi_reduction <add>, %25, %cst_11 [0] : vector<128x128xf32> to vector<128xf32>
      %27 = vector.shape_cast %26 : vector<128xf32> to vector<1x128xf32>
      %28 = arith.mulf %25, %18 : vector<128x128xf32>
      %cst_12 = arith.constant dense<0.000000e+00> : vector<128xf32>
      %29 = vector.multi_reduction <add>, %28, %cst_12 [0] : vector<128x128xf32> to vector<128xf32>
      %30 = vector.shape_cast %29 : vector<128xf32> to vector<1x128xf32>
      %cst_13 = arith.constant 1.250000e-01 : f32
      %31 = vector.broadcast %cst_13 : f32 to vector<1x128xf32>
      %32 = arith.mulf %27, %31 : vector<1x128xf32>
      %cst_14 = arith.constant 1.250000e-01 : f32
      %33 = vector.broadcast %cst_14 : f32 to vector<1x128xf32>
      %34 = arith.mulf %30, %33 : vector<1x128xf32>
      %35 = arith.mulf %32, %32 : vector<1x128xf32>
      %36 = arith.subf %34, %35 : vector<1x128xf32>
      %cst_15 = arith.constant 9.99999974E-6 : f32
      %37 = vector.broadcast %cst_15 : f32 to vector<1x128xf32>
      %38 = arith.addf %36, %37 : vector<1x128xf32>
      %39 = math.rsqrt %38 : vector<1x128xf32>
      %c0_16 = arith.constant 0 : index
      %c0_17 = arith.constant 0 : index
      %40 = vector.load %arg3[%c0_16, %c0_17] : memref<1x128xf32, #tpu.memory_space<vmem>>, vector<1x128xf32>
      %41 = arith.mulf %39, %40 : vector<1x128xf32>
      %42 = vector.broadcast %32 : vector<1x128xf32> to vector<128x128xf32>
      %43 = arith.subf %18, %42 : vector<128x128xf32>
      %44 = vector.broadcast %41 : vector<1x128xf32> to vector<128x128xf32>
      %45 = arith.mulf %43, %44 : vector<128x128xf32>
      %c0_18 = arith.constant 0 : index
      %c0_19 = arith.constant 0 : index
      %46 = vector.load %arg4[%c0_18, %c0_19] : memref<1x128xf32, #tpu.memory_space<vmem>>, vector<1x128xf32>
      %47 = vector.broadcast %46 : vector<1x128xf32> to vector<128x128xf32>
      %48 = arith.addf %45, %47 : vector<128x128xf32>
      %c0_20 = arith.constant 0 : index
      %c0_21 = arith.constant 0 : index
      %49 = vector.load %arg5[%c0_20, %c0_21] : memref<128x128xf32, #tpu.memory_space<vmem>>, vector<128x128xf32>
      tpu.vector_store %arg5[%c0_20, %c0_21], %48 {strides = array<i32>} : memref<128x128xf32, #tpu.memory_space<vmem>>, vector<128x128xf32>,
    } else {
    }
    return
  }
  func.func @transform_0(%arg0: i32, %arg1: i32) -> (i32, i32) {
    %c0_i32 = arith.constant 0 : i32
    %c0_i32_0 = arith.constant 0 : i32
    return %c0_i32, %arg1 : i32, i32
  }
  func.func @transform_1(%arg0: i32, %arg1: i32) -> (i32, i32) {
    %c0_i32 = arith.constant 0 : i32
    %c0_i32_0 = arith.constant 0 : i32
    return %c0_i32, %arg0 : i32, i32
  }
  func.func @transform_2(%arg0: i32, %arg1: i32) -> (i32, i32) {
    %c0_i32 = arith.constant 0 : i32
    %c0_i32_0 = arith.constant 0 : i32
    return %c0_i32, %arg0 : i32, i32
  }
  func.func @transform_3(%arg0: i32, %arg1: i32) -> (i32, i32) {
    %c0_i32 = arith.constant 0 : i32
    %c0_i32_0 = arith.constant 0 : i32
    return %c0_i32, %arg0 : i32, i32
  }
}

</mosaic_0001>

<llo_original>
// kernel: tpu_custom_call.1
$region0: #{tpu_custom_call.1}
  #allocation0 [shape = 'u32[]', space=smem, size = 0x4, offset = 0x4, fixed_abs, tag = 'smem constant byte address 0x4 - core index']
  #allocation1 [shape = 'u32[144,128]{1,0:T(1,128)}', space=vmem, size = 0x12000, scoped, tag = 'internal scratch']
  %s0 = inlined_call_operand.vmem [shape: f32[128,32], index: 0, kind: input, shape index: {}]
  %s1 = inlined_call_operand.vmem [shape: f32[1,128], index: 1, kind: input, shape index: {}]
  %s2 = inlined_call_operand.vmem [shape: f32[1,128], index: 2, kind: input, shape index: {}]
  %s3 = inlined_call_operand.hbm [shape: f32[128,128], index: 3, kind: output, shape index: {}]
  %s4 = sld [smem:[#allocation0]]
  $region34: #{tpu_custom_call.1} parent=0
    _
  %s6 = ssub.s32 1, %s4
  %s7 = scalar_select 0, %s6, %s4
  $region1: #{tpu_custom_call.1} parent=0
    #allocation2 [shape = 'u8[65536]{0}', space=vmem, size = 0x10000, scoped, tag = 'output window, operand 0, single buffered']
    #allocation3 [shape = 's32[1]{0}', space=sflag, size = 0x4, scoped, tag = 'scoped memory for tpu_custom_call.1']
    %8 = vsyncpa [#allocation3], 0
    // Predicated region
    $region2: #{tpu_custom_call.1} parent=1 // pred_check
      _
    $region3: #{tpu_custom_call.1} parent=1 // pred_check_branch
      %10 = sbr.rel (0) target = $region5
    $region4: #{tpu_custom_call.1} parent=1 // pred_region
      _
    $region5: #{tpu_custom_call.1} parent=1 // pred_fallthru
      _
    // Predicated region
    $region6: #{tpu_custom_call.1} parent=1 // pred_check
      _
    $region7: #{tpu_custom_call.1} parent=1 // pred_check_branch
      %12 = sbr.rel (0) target = $region9
    $region8: #{tpu_custom_call.1} parent=1 // pred_region
      _
    $region9: #{tpu_custom_call.1} parent=1 // pred_fallthru
      _
    // Predicated region
    $region10: #{tpu_custom_call.1} parent=1 // pred_check
      _
    $region11: #{tpu_custom_call.1} parent=1 // pred_check_branch
      %14 = sbr.rel (0) target = $region13
    $region12: #{tpu_custom_call.1} parent=1 // pred_region
      _
    $region13: #{tpu_custom_call.1} parent=1 // pred_fallthru
      _
    %v15 = vld [vmem:[%s0] sm:$0xff]
    %v16 = vld [vmem:[%s0 + $0x8] sm:$0xff]
    %v17 = vld [vmem:[%s0 + $0x10] sm:$0xff]
    %v18 = vld [vmem:[%s0 + $0x18] sm:$0xff]
    %v19 = vld [vmem:[%s0 + $0x20] sm:$0xff]
    %v20 = vld [vmem:[%s0 + $0x28] sm:$0xff]
    %v21 = vld [vmem:[%s0 + $0x30] sm:$0xff]
    %v22 = vld [vmem:[%s0 + $0x38] sm:$0xff]
    %v23 = vld [vmem:[%s0 + $0x40] sm:$0xff]
    %v24 = vld [vmem:[%s0 + $0x48] sm:$0xff]
    %v25 = vld [vmem:[%s0 + $0x50] sm:$0xff]
    %v26 = vld [vmem:[%s0 + $0x58] sm:$0xff]
    %v27 = vld [vmem:[%s0 + $0x60] sm:$0xff]
    %v28 = vld [vmem:[%s0 + $0x68] sm:$0xff]
    %v29 = vld [vmem:[%s0 + $0x70] sm:$0xff]
    %v30 = vld [vmem:[%s0 + $0x78] sm:$0xff]
    %vm31 = vcmask 261120
    %v33 = vsel %vm31, %v15, 0
    %v36 = vsel %vm31, %v16, 0
    %v39 = vsel %vm31, %v17, 0
    %v42 = vsel %vm31, %v18, 0
    %v45 = vsel %vm31, %v19, 0
    %v48 = vsel %vm31, %v20, 0
    %v51 = vsel %vm31, %v21, 0
    %v54 = vsel %vm31, %v22, 0
    %v57 = vsel %vm31, %v23, 0
    %v60 = vsel %vm31, %v24, 0
    %v63 = vsel %vm31, %v25, 0
    %v66 = vsel %vm31, %v26, 0
    %v69 = vsel %vm31, %v27, 0
    %v72 = vsel %vm31, %v28, 0
    %v75 = vsel %vm31, %v29, 0
    %v78 = vsel %vm31, %v30, 0
    %80 = vmatprep.subr.mxu0 0.0
    %81 = vmatpush1.xpose.msra.mxu0 %v33
    %82 = vmatprep.subr.mxu0 0.0
    %83 = vmatpush1.xpose.msra.mxu0 %v36
    %84 = vmatprep.subr.mxu0 0.0
    %85 = vmatpush1.xpose.msra.mxu0 %v39
    %86 = vmatprep.subr.mxu0 0.0
    %87 = vmatpush1.xpose.msra.mxu0 %v42
    %88 = vmatprep.subr.mxu0 0.0
    %89 = vmatpush1.xpose.msra.mxu0 %v45
    %90 = vmatprep.subr.mxu0 0.0
    %91 = vmatpush1.xpose.msra.mxu0 %v48
    %92 = vmatprep.subr.mxu0 0.0
    %93 = vmatpush1.xpose.msra.mxu0 %v51
    %94 = vmatprep.subr.mxu0 0.0
    %95 = vmatpush1.xpose.msra.mxu0 %v54
    %96 = vmatprep.subr.mxu0 0.0
    %97 = vmatpush1.xpose.msra.mxu0 %v57
    %98 = vmatprep.subr.mxu0 0.0
    %99 = vmatpush1.xpose.msra.mxu0 %v60
    %100 = vmatprep.subr.mxu0 0.0
    %101 = vmatpush1.xpose.msra.mxu0 %v63
    %102 = vmatprep.subr.mxu0 0.0
    %103 = vmatpush1.xpose.msra.mxu0 %v66
    %104 = vmatprep.subr.mxu0 0.0
    %105 = vmatpush1.xpose.msra.mxu0 %v69
    %106 = vmatprep.subr.mxu0 0.0
    %107 = vmatpush1.xpose.msra.mxu0 %v72
    %108 = vmatprep.subr.mxu0 0.0
    %109 = vmatpush1.xpose.msra.mxu0 %v75
    %110 = vmatprep.subr.mxu0 0.0
    %111 = vmatpush1.xpose.msra.mxu0 %v78
    %112 = vmatprep.subr.mxu0 0.0
    %113 = vmatpush1.xpose.msra.mxu0 0.0
    %114 = vmatprep.subr.mxu0 0.0
    %115 = vmatpush1.xpose.msra.mxu0 0.0
    %116 = vmatprep.subr.mxu0 0.0
    %117 = vmatpush1.xpose.msra.mxu0 0.0
    %118 = vmatprep.subr.mxu0 0.0
    %119 = vmatpush1.xpose.msra.mxu0 0.0
    %120 = vmatprep.subr.mxu0 0.0
    %121 = vmatpush1.xpose.msra.mxu0 0.0
    %122 = vmatprep.subr.mxu0 0.0
    %123 = vmatpush1.xpose.msra.mxu0 0.0
    %124 = vmatprep.subr.mxu0 0.0
    %125 = vmatpush1.xpose.msra.mxu0 0.0
    %126 = vmatprep.subr.mxu0 0.0
    %127 = vmatpush1.xpose.msra.mxu0 0.0
    %128 = vmatprep.subr.mxu0 0.0
    %129 = vmatpush1.xpose.msra.mxu0 0.0
    %130 = vmatprep.subr.mxu0 0.0
    %131 = vmatpush1.xpose.msra.mxu0 0.0
    %132 = vmatprep.subr.mxu0 0.0
    %133 = vmatpush1.xpose.msra.mxu0 0.0
    %134 = vmatprep.subr.mxu0 0.0
    %135 = vmatpush1.xpose.msra.mxu0 0.0
    %136 = vmatprep.subr.mxu0 0.0
    %137 = vmatpush1.xpose.msra.mxu0 0.0
    %138 = vmatprep.subr.mxu0 0.0
    %139 = vmatpush1.xpose.msra.mxu0 0.0
    %140 = vmatprep.subr.mxu0 0.0
    %141 = vmatpush1.xpose.msra.mxu0 0.0
    %142 = vmatprep.subr.mxu0 0.0
    %143 = vmatpush1.xpose.msra.mxu0 0.0
    %144 = vmatprep.mubr.f32.mxu0 0.0
    %145 = vmatmul.mubr.f32.gmra.mrb[0].mxu0 %v33
    %v146 = vpop.f32.mrb[0].mxu0
    %v147 = vadd.f32 0.0, %v146
    %v148 = vpop.f32.mrb[0].mxu0
    %149 = vmatprep.mubr.f32.mxu0 0.0
    %150 = vmatmul.mubr.f32.gmra.mrb[0].mxu0 %v36
    %v151 = vpop.f32.mrb[0].mxu0
    %v152 = vadd.f32 0.0, %v151
    %v153 = vpop.f32.mrb[0].mxu0
    %154 = vmatprep.mubr.f32.mxu0 0.0
    %155 = vmatmul.mubr.f32.gmra.mrb[0].mxu0 %v39
    %v156 = vpop.f32.mrb[0].mxu0
    %v157 = vadd.f32 0.0, %v156
    %v158 = vpop.f32.mrb[0].mxu0
    %159 = vmatprep.mubr.f32.mxu0 0.0
    %160 = vmatmul.mubr.f32.gmra.mrb[0].mxu0 %v42
    %v161 = vpop.f32.mrb[0].mxu0
    %v162 = vadd.f32 0.0, %v161
    %v163 = vpop.f32.mrb[0].mxu0
    %164 = vmatprep.mubr.f32.mxu0 0.0
    %165 = vmatmul.mubr.f32.gmra.mrb[0].mxu0 %v45
    %v166 = vpop.f32.mrb[0].mxu0
    %v167 = vadd.f32 0.0, %v166
    %v168 = vpop.f32.mrb[0].mxu0
    %169 = vmatprep.mubr.f32.mxu0 0.0
    %170 = vmatmul.mubr.f32.gmra.mrb[0].mxu0 %v48
    %v171 = vpop.f32.mrb[0].mxu0
    %v172 = vadd.f32 0.0, %v171
    %v173 = vpop.f32.mrb[0].mxu0
    %174 = vmatprep.mubr.f32.mxu0 0.0
    %175 = vmatmul.mubr.f32.gmra.mrb[0].mxu0 %v51
    %v176 = vpop.f32.mrb[0].mxu0
    %v177 = vadd.f32 0.0, %v176
    %v178 = vpop.f32.mrb[0].mxu0
    %179 = vmatprep.mubr.f32.mxu0 0.0
    %180 = vmatmul.mubr.f32.gmra.mrb[0].mxu0 %v54
    %v181 = vpop.f32.mrb[0].mxu0
    %v182 = vadd.f32 0.0, %v181
    %v183 = vpop.f32.mrb[0].mxu0
    %184 = vmatprep.mubr.f32.mxu0 0.0
    %185 = vmatmul.mubr.f32.gmra.mrb[0].mxu0 %v57
    %v186 = vpop.f32.mrb[0].mxu0
    %v187 = vadd.f32 0.0, %v186
    %v188 = vpop.f32.mrb[0].mxu0
    %189 = vmatprep.mubr.f32.mxu0 0.0
    %190 = vmatmul.mubr.f32.gmra.mrb[0].mxu0 %v60
    %v191 = vpop.f32.mrb[0].mxu0
    %v192 = vadd.f32 0.0, %v191
    %v193 = vpop.f32.mrb[0].mxu0
    %194 = vmatprep.mubr.f32.mxu0 0.0
    %195 = vmatmul.mubr.f32.gmra.mrb[0].mxu0 %v63
    %v196 = vpop.f32.mrb[0].mxu0
    %v197 = vadd.f32 0.0, %v196
    %v198 = vpop.f32.mrb[0].mxu0
    %199 = vmatprep.mubr.f32.mxu0 0.0
    %200 = vmatmul.mubr.f32.gmra.mrb[0].mxu0 %v66
    %v201 = vpop.f32.mrb[0].mxu0
    %v202 = vadd.f32 0.0, %v201
    %v203 = vpop.f32.mrb[0].mxu0
    %204 = vmatprep.mubr.f32.mxu0 0.0
    %205 = vmatmul.mubr.f32.gmra.mrb[0].mxu0 %v69
    %v206 = vpop.f32.mrb[0].mxu0
    %v207 = vadd.f32 0.0, %v206
    %v208 = vpop.f32.mrb[0].mxu0
    %209 = vmatprep.mubr.f32.mxu0 0.0
    %210 = vmatmul.mubr.f32.gmra.mrb[0].mxu0 %v72
    %v211 = vpop.f32.mrb[0].mxu0
    %v212 = vadd.f32 0.0, %v211
    %v213 = vpop.f32.mrb[0].mxu0
    %214 = vmatprep.mubr.f32.mxu0 0.0
    %215 = vmatmul.mubr.f32.gmra.mrb[0].mxu0 %v75
    %v216 = vpop.f32.mrb[0].mxu0
    %v217 = vadd.f32 0.0, %v216
    %v218 = vpop.f32.mrb[0].mxu0
    %219 = vmatprep.mubr.f32.mxu0 0.0
    %220 = vmatmul.mubr.f32.gmra.mrb[0].mxu0 %v78
    %v221 = vpop.f32.mrb[0].mxu0
    %v222 = vadd.f32 0.0, %v221
    %v223 = vpop.f32.mrb[0].mxu0
    %224 = vdwg.mxu0
    %p225 = scmp.eq.s32.totalorder 0, 0
    // Predicated region
    $region14: #{tpu_custom_call.1} parent=1 // pred_check
      %p226 = pneg %p225
    $region15: #{tpu_custom_call.1} parent=1 // pred_check_branch
      %228 = sbr.rel (%p226) target = $region17
    $region16: #{tpu_custom_call.1} parent=1 // pred_region
      %229 = vst [vmem:[#allocation2] sm:$0xff] %v147
      %230 = vst [vmem:[#allocation2 + $0x8] sm:$0xff] %v152
      %231 = vst [vmem:[#allocation2 + $0x10] sm:$0xff] %v157
      %232 = vst [vmem:[#allocation2 + $0x18] sm:$0xff] %v162
      %233 = vst [vmem:[#allocation2 + $0x20] sm:$0xff] %v167
      %234 = vst [vmem:[#allocation2 + $0x28] sm:$0xff] %v172
      %235 = vst [vmem:[#allocation2 + $0x30] sm:$0xff] %v177
      %236 = vst [vmem:[#allocation2 + $0x38] sm:$0xff] %v182
      %237 = vst [vmem:[#allocation2 + $0x40] sm:$0xff] %v187
      %238 = vst [vmem:[#allocation2 + $0x48] sm:$0xff] %v192
      %239 = vst [vmem:[#allocation2 + $0x50] sm:$0xff] %v197
      %240 = vst [vmem:[#allocation2 + $0x58] sm:$0xff] %v202
      %241 = vst [vmem:[#allocation2 + $0x60] sm:$0xff] %v207
      %242 = vst [vmem:[#allocation2 + $0x68] sm:$0xff] %v212
      %243 = vst [vmem:[#allocation2 + $0x70] sm:$0xff] %v217
      %244 = vst [vmem:[#allocation2 + $0x78] sm:$0xff] %v222
    $region17: #{tpu_custom_call.1} parent=1 // pred_fallthru
      _
    %p245 = scmp.gt.s32.totalorder 0, 0
    // Predicated region
    $region18: #{tpu_custom_call.1} parent=1 // pred_check
      %p246 = pneg %p245
    $region19: #{tpu_custom_call.1} parent=1 // pred_check_branch
      %248 = sbr.rel (%p246) target = $region21
    $region20: #{tpu_custom_call.1} parent=1 // pred_region
      %v249 = vld [vmem:[#allocation2] sm:$0xff]
      %v250 = vld [vmem:[#allocation2 + $0x8] sm:$0xff]
      %v251 = vld [vmem:[#allocation2 + $0x10] sm:$0xff]
      %v252 = vld [vmem:[#allocation2 + $0x18] sm:$0xff]
      %v253 = vld [vmem:[#allocation2 + $0x20] sm:$0xff]
      %v254 = vld [vmem:[#allocation2 + $0x28] sm:$0xff]
      %v255 = vld [vmem:[#allocation2 + $0x30] sm:$0xff]
      %v256 = vld [vmem:[#allocation2 + $0x38] sm:$0xff]
      %v257 = vld [vmem:[#allocation2 + $0x40] sm:$0xff]
      %v258 = vld [vmem:[#allocation2 + $0x48] sm:$0xff]
      %v259 = vld [vmem:[#allocation2 + $0x50] sm:$0xff]
      %v260 = vld [vmem:[#allocation2 + $0x58] sm:$0xff]
      %v261 = vld [vmem:[#allocation2 + $0x60] sm:$0xff]
      %v262 = vld [vmem:[#allocation2 + $0x68] sm:$0xff]
      %v263 = vld [vmem:[#allocation2 + $0x70] sm:$0xff]
      %v264 = vld [vmem:[#allocation2 + $0x78] sm:$0xff]
      %v265 = vadd.f32 %v249, %v147
      %v266 = vadd.f32 %v250, %v152
      %v267 = vadd.f32 %v251, %v157
      %v268 = vadd.f32 %v252, %v162
      %v269 = vadd.f32 %v253, %v167
      %v270 = vadd.f32 %v254, %v172
      %v271 = vadd.f32 %v255, %v177
      %v272 = vadd.f32 %v256, %v182
      %v273 = vadd.f32 %v257, %v187
      %v274 = vadd.f32 %v258, %v192
      %v275 = vadd.f32 %v259, %v197
      %v276 = vadd.f32 %v260, %v202
      %v277 = vadd.f32 %v261, %v207
      %v278 = vadd.f32 %v262, %v212
      %v279 = vadd.f32 %v263, %v217
      %v280 = vadd.f32 %v264, %v222
      %281 = vst [vmem:[#allocation2] sm:$0xff] %v265
      %282 = vst [vmem:[#allocation2 + $0x8] sm:$0xff] %v266
      %283 = vst [vmem:[#allocation2 + $0x10] sm:$0xff] %v267
      %284 = vst [vmem:[#allocation2 + $0x18] sm:$0xff] %v268
      %285 = vst [vmem:[#allocation2 + $0x20] sm:$0xff] %v269
      %286 = vst [vmem:[#allocation2 + $0x28] sm:$0xff] %v270
      %287 = vst [vmem:[#allocation2 + $0x30] sm:$0xff] %v271
      %288 = vst [vmem:[#allocation2 + $0x38] sm:$0xff] %v272
      %289 = vst [vmem:[#allocation2 + $0x40] sm:$0xff] %v273
      %290 = vst [vmem:[#allocation2 + $0x48] sm:$0xff] %v274
      %291 = vst [vmem:[#allocation2 + $0x50] sm:$0xff] %v275
      %292 = vst [vmem:[#allocation2 + $0x58] sm:$0xff] %v276
      %293 = vst [vmem:[#allocation2 + $0x60] sm:$0xff] %v277
      %294 = vst [vmem:[#allocation2 + $0x68] sm:$0xff] %v278
      %295 = vst [vmem:[#allocation2 + $0x70] sm:$0xff] %v279
      %296 = vst [vmem:[#allocation2 + $0x78] sm:$0xff] %v280
    $region21: #{tpu_custom_call.1} parent=1 // pred_fallthru
      _
    // Predicated region
    $region22: #{tpu_custom_call.1} parent=1 // pred_check
      %p297 = pneg %p225
    $region23: #{tpu_custom_call.1} parent=1 // pred_check_branch
      %299 = sbr.rel (%p297) target = $region25
    $region24: #{tpu_custom_call.1} parent=1 // pred_region
      %v300 = vld [vmem:[#allocation2] sm:$0xff]
      %v301 = vld [vmem:[#allocation2 + $0x8] sm:$0xff]
      %v302 = vld [vmem:[#allocation2 + $0x10] sm:$0xff]
      %v303 = vld [vmem:[#allocation2 + $0x18] sm:$0xff]
      %v304 = vld [vmem:[#allocation2 + $0x20] sm:$0xff]
      %v305 = vld [vmem:[#allocation2 + $0x28] sm:$0xff]
      %v306 = vld [vmem:[#allocation2 + $0x30] sm:$0xff]
      %v307 = vld [vmem:[#allocation2 + $0x38] sm:$0xff]
      %v308 = vld [vmem:[#allocation2 + $0x40] sm:$0xff]
      %v309 = vld [vmem:[#allocation2 + $0x48] sm:$0xff]
      %v310 = vld [vmem:[#allocation2 + $0x50] sm:$0xff]
      %v311 = vld [vmem:[#allocation2 + $0x58] sm:$0xff]
      %v312 = vld [vmem:[#allocation2 + $0x60] sm:$0xff]
      %v313 = vld [vmem:[#allocation2 + $0x68] sm:$0xff]
      %v314 = vld [vmem:[#allocation2 + $0x70] sm:$0xff]
      %v315 = vld [vmem:[#allocation2 + $0x78] sm:$0xff]
      %v316 = vmul.f32 %v300, 0.5
      %v317 = vmul.f32 %v301, 0.5
      %v318 = vmul.f32 %v302, 0.5
      %v319 = vmul.f32 %v303, 0.5
      %v320 = vmul.f32 %v304, 0.5
      %v321 = vmul.f32 %v305, 0.5
      %v322 = vmul.f32 %v306, 0.5
      %v323 = vmul.f32 %v307, 0.5
      %v324 = vmul.f32 %v308, 0.5
      %v325 = vmul.f32 %v309, 0.5
      %v326 = vmul.f32 %v310, 0.5
      %v327 = vmul.f32 %v311, 0.5
      %v328 = vmul.f32 %v312, 0.5
      %v329 = vmul.f32 %v313, 0.5
      %v330 = vmul.f32 %v314, 0.5
      %v331 = vmul.f32 %v315, 0.5
      %v332 = vtanh.pop %v316
      %v333 = vtanh.pop %v317
      %v334 = vtanh.pop %v318
      %v335 = vtanh.pop %v319
      %v336 = vtanh.pop %v320
      %v337 = vtanh.pop %v321
      %v338 = vtanh.pop %v322
      %v339 = vtanh.pop %v323
      %v340 = vtanh.pop %v324
      %v341 = vtanh.pop %v325
      %v342 = vtanh.pop %v326
      %v343 = vtanh.pop %v327
      %v344 = vtanh.pop %v328
      %v345 = vtanh.pop %v329
      %v346 = vtanh.pop %v330
      %v347 = vtanh.pop %v331
      %v348 = vadd.f32 %v332, 1.0
      %v349 = vadd.f32 %v333, 1.0
      %v350 = vadd.f32 %v334, 1.0
      %v351 = vadd.f32 %v335, 1.0
      %v352 = vadd.f32 %v336, 1.0
      %v353 = vadd.f32 %v337, 1.0
      %v354 = vadd.f32 %v338, 1.0
      %v355 = vadd.f32 %v339, 1.0
      %v356 = vadd.f32 %v340, 1.0
      %v357 = vadd.f32 %v341, 1.0
      %v358 = vadd.f32 %v342, 1.0
      %v359 = vadd.f32 %v343, 1.0
      %v360 = vadd.f32 %v344, 1.0
      %v361 = vadd.f32 %v345, 1.0
      %v362 = vadd.f32 %v346, 1.0
      %v363 = vadd.f32 %v347, 1.0
      %v364 = vmul.f32 %v348, 0.5
      %v365 = vmul.f32 %v349, 0.5
      %v366 = vmul.f32 %v350, 0.5
      %v367 = vmul.f32 %v351, 0.5
      %v368 = vmul.f32 %v352, 0.5
      %v369 = vmul.f32 %v353, 0.5
      %v370 = vmul.f32 %v354, 0.5
      %v371 = vmul.f32 %v355, 0.5
      %v372 = vmul.f32 %v356, 0.5
      %v373 = vmul.f32 %v357, 0.5
      %v374 = vmul.f32 %v358, 0.5
      %v375 = vmul.f32 %v359, 0.5
      %v376 = vmul.f32 %v360, 0.5
      %v377 = vmul.f32 %v361, 0.5
      %v378 = vmul.f32 %v362, 0.5
      %v379 = vmul.f32 %v363, 0.5
      %v380 = vlaneseq
      %v381 = vshrl.u32 %v380, 7
      %v382 = vadd.s32 %v381, 8
      %v383 = vadd.s32 %v381, 16
      %v384 = vadd.s32 %v381, 24
      %v385 = vadd.s32 %v381, 32
      %v386 = vadd.s32 %v381, 40
      %v387 = vadd.s32 %v381, 48
      %v388 = vadd.s32 %v381, 56
      %v389 = vadd.s32 %v381, 64
      %v390 = vadd.s32 %v381, 72
      %v391 = vadd.s32 %v381, 80
      %v392 = vadd.s32 %v381, 88
      %v393 = vadd.s32 %v381, 96
      %v394 = vadd.s32 %v381, 104
      %v395 = vadd.s32 %v381, 112
      %v396 = vadd.s32 %v381, 120
      %vm397 = vcmp.lt.s32.totalorder %v381, 8
      %vm398 = vcmp.lt.s32.totalorder %v382, 8
      %vm399 = vcmp.lt.s32.totalorder %v383, 8
      %vm400 = vcmp.lt.s32.totalorder %v384, 8
      %vm401 = vcmp.lt.s32.totalorder %v385, 8
      %vm402 = vcmp.lt.s32.totalorder %v386, 8
      %vm403 = vcmp.lt.s32.totalorder %v387, 8
      %vm404 = vcmp.lt.s32.totalorder %v388, 8
      %vm405 = vcmp.lt.s32.totalorder %v389, 8
      %vm406 = vcmp.lt.s32.totalorder %v390, 8
      %vm407 = vcmp.lt.s32.totalorder %v391, 8
      %vm408 = vcmp.lt.s32.totalorder %v392, 8
      %vm409 = vcmp.lt.s32.totalorder %v393, 8
      %vm410 = vcmp.lt.s32.totalorder %v394, 8
      %vm411 = vcmp.lt.s32.totalorder %v395, 8
      %vm412 = vcmp.lt.s32.totalorder %v396, 8
      %v413 = vsel %vm397, 1, 0
      %v414 = vsel %vm398, 1, 0
      %v415 = vsel %vm399, 1, 0
      %v416 = vsel %vm400, 1, 0
      %v417 = vsel %vm401, 1, 0
      %v418 = vsel %vm402, 1, 0
      %v419 = vsel %vm403, 1, 0
      %v420 = vsel %vm404, 1, 0
      %v421 = vsel %vm405, 1, 0
      %v422 = vsel %vm406, 1, 0
      %v423 = vsel %vm407, 1, 0
      %v424 = vsel %vm408, 1, 0
      %v425 = vsel %vm409, 1, 0
      %v426 = vsel %vm410, 1, 0
      %v427 = vsel %vm411, 1, 0
      %v428 = vsel %vm412, 1, 0
      %v429 = vcvt.s32.f32 %v413
      %v430 = vcvt.s32.f32 %v414
      %v431 = vcvt.s32.f32 %v415
      %v432 = vcvt.s32.f32 %v416
      %v433 = vcvt.s32.f32 %v417
      %v434 = vcvt.s32.f32 %v418
      %v435 = vcvt.s32.f32 %v419
      %v436 = vcvt.s32.f32 %v420
      %v437 = vcvt.s32.f32 %v421
      %v438 = vcvt.s32.f32 %v422
      %v439 = vcvt.s32.f32 %v423
      %v440 = vcvt.s32.f32 %v424
      %v441 = vcvt.s32.f32 %v425
      %v442 = vcvt.s32.f32 %v426
      %v443 = vcvt.s32.f32 %v427
      %v444 = vcvt.s32.f32 %v428
      %v445 = vmul.f32 %v364, %v429
      %v446 = vmul.f32 %v365, %v430
      %v447 = vmul.f32 %v366, %v431
      %v448 = vmul.f32 %v367, %v432
      %v449 = vmul.f32 %v368, %v433
      %v450 = vmul.f32 %v369, %v434
      %v451 = vmul.f32 %v370, %v435
      %v452 = vmul.f32 %v371, %v436
      %v453 = vmul.f32 %v372, %v437
      %v454 = vmul.f32 %v373, %v438
      %v455 = vmul.f32 %v374, %v439
      %v456 = vmul.f32 %v375, %v440
      %v457 = vmul.f32 %v376, %v441
      %v458 = vmul.f32 %v377, %v442
      %v459 = vmul.f32 %v378, %v443
      %v460 = vmul.f32 %v379, %v444
      %v461 = vadd.f32 %v445, %v446
      %v462 = vadd.f32 %v461, %v447
      %v463 = vadd.f32 %v462, %v448
      %v464 = vadd.f32 %v463, %v449
      %v465 = vadd.f32 %v464, %v450
      %v466 = vadd.f32 %v465, %v451
      %v467 = vadd.f32 %v466, %v452
      %v468 = vadd.f32 %v467, %v453
      %v469 = vadd.f32 %v468, %v454
      %v470 = vadd.f32 %v469, %v455
      %v471 = vadd.f32 %v470, %v456
      %v472 = vadd.f32 %v471, %v457
      %v473 = vadd.f32 %v472, %v458
      %v474 = vadd.f32 %v473, %v459
      %v475 = vadd.f32 %v474, %v460
      %v476 = vrot.slane %v475, 4
      %v477 = vadd.f32 %v475, %v476
      %v478 = vrot.slane %v477, 2
      %v479 = vadd.f32 %v477, %v478
      %v480 = vrot.slane %v479, 1
      %v481 = vadd.f32 %v479, %v480
      %v482 = vmul.f32 %v445, %v364
      %v483 = vmul.f32 %v446, %v365
      %v484 = vmul.f32 %v447, %v366
      %v485 = vmul.f32 %v448, %v367
      %v486 = vmul.f32 %v449, %v368
      %v487 = vmul.f32 %v450, %v369
      %v488 = vmul.f32 %v451, %v370
      %v489 = vmul.f32 %v452, %v371
      %v490 = vmul.f32 %v453, %v372
      %v491 = vmul.f32 %v454, %v373
      %v492 = vmul.f32 %v455, %v374
      %v493 = vmul.f32 %v456, %v375
      %v494 = vmul.f32 %v457, %v376
      %v495 = vmul.f32 %v458, %v377
      %v496 = vmul.f32 %v459, %v378
      %v497 = vmul.f32 %v460, %v379
      %v498 = vadd.f32 %v482, %v483
      %v499 = vadd.f32 %v498, %v484
      %v500 = vadd.f32 %v499, %v485
      %v501 = vadd.f32 %v500, %v486
      %v502 = vadd.f32 %v501, %v487
      %v503 = vadd.f32 %v502, %v488
      %v504 = vadd.f32 %v503, %v489
      %v505 = vadd.f32 %v504, %v490
      %v506 = vadd.f32 %v505, %v491
      %v507 = vadd.f32 %v506, %v492
      %v508 = vadd.f32 %v507, %v493
      %v509 = vadd.f32 %v508, %v494
      %v510 = vadd.f32 %v509, %v495
      %v511 = vadd.f32 %v510, %v496
      %v512 = vadd.f32 %v511, %v497
      %v513 = vrot.slane %v512, 4
      %v514 = vadd.f32 %v512, %v513
      %v515 = vrot.slane %v514, 2
      %v516 = vadd.f32 %v514, %v515
      %v517 = vrot.slane %v516, 1
      %v518 = vadd.f32 %v516, %v517
      %v519 = vmul.f32 %v481, 0.125
      %v520 = vmul.f32 %v518, 0.125
      %v521 = vmul.f32 %v519, %v519
      %v522 = vsub.f32 %v520, %v521
      %v523 = vadd.f32 %v522, 1e-05
      %v524 = vrsqrt.pop %v523
      %v525 = vld [vmem:[%s1] sm:$0x1]
      %v526 = vmul.f32 %v524, %v525
      %v527 = vsub.f32 %v364, %v519
      %v528 = vsub.f32 %v365, %v519
      %v529 = vsub.f32 %v366, %v519
      %v530 = vsub.f32 %v367, %v519
      %v531 = vsub.f32 %v368, %v519
      %v532 = vsub.f32 %v369, %v519
      %v533 = vsub.f32 %v370, %v519
      %v534 = vsub.f32 %v371, %v519
      %v535 = vsub.f32 %v372, %v519
      %v536 = vsub.f32 %v373, %v519
      %v537 = vsub.f32 %v374, %v519
      %v538 = vsub.f32 %v375, %v519
      %v539 = vsub.f32 %v376, %v519
      %v540 = vsub.f32 %v377, %v519
      %v541 = vsub.f32 %v378, %v519
      %v542 = vsub.f32 %v379, %v519
      %v543 = vlaneseq
      %v544 = vshrl.u32 %v543, 7
      %v545 = vsub.s32 0, %v544
      %v546 = vrot.slane %v526, %v545
      %v547 = vmul.f32 %v527, %v546
      %v548 = vmul.f32 %v528, %v546
      %v549 = vmul.f32 %v529, %v546
      %v550 = vmul.f32 %v530, %v546
      %v551 = vmul.f32 %v531, %v546
      %v552 = vmul.f32 %v532, %v546
      %v553 = vmul.f32 %v533, %v546
      %v554 = vmul.f32 %v534, %v546
      %v555 = vmul.f32 %v535, %v546
      %v556 = vmul.f32 %v536, %v546
      %v557 = vmul.f32 %v537, %v546
      %v558 = vmul.f32 %v538, %v546
      %v559 = vmul.f32 %v539, %v546
      %v560 = vmul.f32 %v540, %v546
      %v561 = vmul.f32 %v541, %v546
      %v562 = vmul.f32 %v542, %v546
      %v563 = vld [vmem:[%s2] sm:$0x1]
      %v565 = vlaneseq
      %v566 = vshrl.u32 %v565, 7
      %v567 = vsub.s32 0, %v566
      %v568 = vrot.slane %v563, %v567
      %v570 = vadd.f32 %v547, %v568
      %v571 = vadd.f32 %v548, %v568
      %v572 = vadd.f32 %v549, %v568
      %v573 = vadd.f32 %v550, %v568
      %v574 = vadd.f32 %v551, %v568
      %v575 = vadd.f32 %v552, %v568
      %v576 = vadd.f32 %v553, %v568
      %v577 = vadd.f32 %v554, %v568
      %v578 = vadd.f32 %v555, %v568
      %v579 = vadd.f32 %v556, %v568
      %v580 = vadd.f32 %v557, %v568
      %v581 = vadd.f32 %v558, %v568
      %v582 = vadd.f32 %v559, %v568
      %v583 = vadd.f32 %v560, %v568
      %v584 = vadd.f32 %v561, %v568
      %v585 = vadd.f32 %v562, %v568
      %586 = vst [vmem:[#allocation2] sm:$0xff] %v570
      %587 = vst [vmem:[#allocation2 + $0x8] sm:$0xff] %v571
      %588 = vst [vmem:[#allocation2 + $0x10] sm:$0xff] %v572
      %589 = vst [vmem:[#allocation2 + $0x18] sm:$0xff] %v573
      %590 = vst [vmem:[#allocation2 + $0x20] sm:$0xff] %v574
      %591 = vst [vmem:[#allocation2 + $0x28] sm:$0xff] %v575
      %592 = vst [vmem:[#allocation2 + $0x30] sm:$0xff] %v576
      %593 = vst [vmem:[#allocation2 + $0x38] sm:$0xff] %v577
      %594 = vst [vmem:[#allocation2 + $0x40] sm:$0xff] %v578
      %595 = vst [vmem:[#allocation2 + $0x48] sm:$0xff] %v579
      %596 = vst [vmem:[#allocation2 + $0x50] sm:$0xff] %v580
      %597 = vst [vmem:[#allocation2 + $0x58] sm:$0xff] %v581
      %598 = vst [vmem:[#allocation2 + $0x60] sm:$0xff] %v582
      %599 = vst [vmem:[#allocation2 + $0x68] sm:$0xff] %v583
      %600 = vst [vmem:[#allocation2 + $0x70] sm:$0xff] %v584
      %601 = vst [vmem:[#allocation2 + $0x78] sm:$0xff] %v585
    $region25: #{tpu_custom_call.1} parent=1 // pred_fallthru
      _
    // Predicated region
    $region26: #{tpu_custom_call.1} parent=1 // pred_check
      _
    $region27: #{tpu_custom_call.1} parent=1 // pred_check_branch
      %603 = sbr.rel (0) target = $region29
    $region28: #{tpu_custom_call.1} parent=1 // pred_region
      %s605 = ssub.s32 2048, 2048
      %606 = vsyncadd [#allocation3], %s605
      %s607 = sshll.u32 [#allocation2], 4
      %s608 = int_to_ptr.vmem [resolvable:$true] %s607
      %613 = dma.vmem_to_hbm [thread:$0]  %s608, 2048, %s3, [#allocation3], 128, 128, 8
    $region29: #{tpu_custom_call.1} parent=1 // pred_fallthru
      _
    // Predicated region
    $region30: #{tpu_custom_call.1} parent=1 // pred_check
      _
    $region31: #{tpu_custom_call.1} parent=1 // pred_check_branch
      %615 = sbr.rel (0) target = $region33
    $region32: #{tpu_custom_call.1} parent=1 // pred_region
      %616 = dma.done [#allocation3], 2048
    $region33: #{tpu_custom_call.1} parent=1 // pred_fallthru
      _
    %617 = vsyncpa [#allocation3], 1

</llo_original>
